<compile_context>
chip_gen: v5e
topology: v5e:2x2
jax: 0.10.0
libtpu: 0.0.40
codegen_flags: <defaults>
</compile_context>

<pallas_src>
import functools

import jax
import jax.numpy as jnp
import numpy as np
from jax import lax
from jax.experimental import pallas as pl
from jax.experimental.pallas import tpu as pltpu


# ----------------------------------------------------------------------------
# Pallas kernel: the whole GGCN-LSPE layer for one (small) graph in VMEM.
# ----------------------------------------------------------------------------
def ggcn_lspe_kernel(
    hp_ref,        # [N, 2*DIN] f32   cat(h, p)
    e_ref,         # [E, DIN]   f32
    ssrc_ref,      # [E, N]     bf16  ssrc[eid, n] = 1 iff src(eid) == n
    sdst_t_ref,    # [E, N]     bf16  sdst_t[eid, n] = 1 iff dst(eid) == n
    w_node_ref,    # [2*DIN, 6*DP] f32 fused [A1 | B2 | C1 | B1 | A2 | C2]
    b_node_ref,    # [1, 6*DP]  f32
    w_b3_ref,      # [DIN, DP]  f32
    b_b3_ref,      # [1, DP]    f32
    gh_ref, betah_ref, ge_ref, betae_ref,   # [1, DP] BN affine params
    # outputs (lane-dense, padded to DP)
    h_out_ref, e_out_ref, p_out_ref,
):
    f32 = jnp.float32
    dp = h_out_ref.shape[1]

    hp = hp_ref[...]
    e = e_ref[...]
    # 0/1 incidence lives in bf16 (half the O(E*N) footprint); convert once to
    # f32 so all activation math stays f32 (exact: values are 0/1).
    ssrc = ssrc_ref[...].astype(f32)      # [E, N] gather src -> edge
    sdst_t = sdst_t_ref[...].astype(f32)  # [E, N] gather dst -> edge / scatter^T

    # --- fused node projections: one lane-dense matmul instead of six -------
    # column blocks: [A1 | B2 | C1 | B1 | A2 | C2]; B* see only h rows and C*
    # only p rows (zero blocks packed in the wrapper), so each slice equals the
    # corresponding nn.Linear output exactly.
    node_proj = jnp.dot(hp, w_node_ref[...], preferred_element_type=f32) + b_node_ref[...]
    A1_h = node_proj[:, 0 * dp:1 * dp]
    B2_h = node_proj[:, 1 * dp:2 * dp]
    C1_p = node_proj[:, 2 * dp:3 * dp]
    src_vals = node_proj[:, 3 * dp:6 * dp]          # [B1_h | A2(h,p) | C2_p] contiguous

    # edge projection
    B3_e = jnp.dot(e, w_b3_ref[...], preferred_element_type=f32) + b_b3_ref[...]

    # --- batched gathers via incidence matmuls (MXU) -------------------------
    src_gather = jnp.dot(ssrc, src_vals, preferred_element_type=f32)     # [E, 3*DP]
    B1_src = src_gather[:, 0 * dp:1 * dp]
    v_src = src_gather[:, 1 * dp:2 * dp]            # v_ij = A2(h_j, p_j)
    c2_src = src_gather[:, 2 * dp:3 * dp]           # C2(p_j)
    B2_dst = jnp.dot(sdst_t, B2_h, preferred_element_type=f32)           # [E, DP]

    hat_eta = B1_src + B2_dst + B3_e                # edata['hat_eta']
    sigma = jax.nn.sigmoid(hat_eta)                 # edata['sigma_hat_eta']

    # --- scatter-sums to dst: contract over the edge axis of sdst_t ----------
    scat = (((0,), (0,)), ((), ()))
    sum_sigma = lax.dot_general(sdst_t, sigma, dimension_numbers=scat,
                                preferred_element_type=f32)              # [N, DP]
    sum_sigma_dst = jnp.dot(sdst_t, sum_sigma, preferred_element_type=f32)  # [E, DP]
    eta = sigma / (sum_sigma_dst + 1e-6)            # edata['eta_ij']

    # both messages (eta*v and eta*C2_p) scattered in one contraction
    msg = jnp.concatenate([eta * v_src, eta * c2_src], axis=-1)          # [E, 2*DP]
    agg = lax.dot_general(sdst_t, msg, dimension_numbers=scat,
                          preferred_element_type=f32)                    # [N, 2*DP]
    h_new = A1_h + agg[:, :dp]
    p_new = C1_p + agg[:, dp:]
    e_new = hat_eta

    # BatchNorm1d in training mode (batch statistics, biased variance).
    # NOTE: stats are full-batch; if this kernel is ever tiled over N/E they
    # must become cross-tile accumulators (pl.when init/finalize).
    def bn(x, gamma, beta):
        mean = jnp.mean(x, axis=0, keepdims=True)
        xc = x - mean
        var = jnp.mean(xc * xc, axis=0, keepdims=True)
        return xc * jax.lax.rsqrt(var + 1e-5) * gamma + beta

    h_out_ref[...] = jnp.maximum(bn(h_new, gh_ref[...], betah_ref[...]), 0.0)
    e_out_ref[...] = jnp.maximum(bn(e_new, ge_ref[...], betae_ref[...]), 0.0)
    p_out_ref[...] = jnp.tanh(p_new)


# ----------------------------------------------------------------------------
# Wrapper: weight fusion / lane padding, incidence matrices, pallas_call
# ----------------------------------------------------------------------------
def _pad_cols(x, dp, value=0.0):
    pad = dp - x.shape[1]
    if pad == 0:
        return x
    return jnp.pad(x, ((0, 0), (0, pad)), constant_values=value)


@functools.partial(jax.jit, static_argnames=("n_nodes", "n_edges"))
def ggcn_lspe_forward(h, e, p, src, dst, params, *, n_nodes, n_edges):
    f32 = jnp.float32
    din = h.shape[1]
    dout = params["wA1"].shape[1]
    dp = ((dout + 127) // 128) * 128          # lane-dense padded feature width

    hp = jnp.concatenate([h, p], axis=-1)     # [N, 2*DIN]

    node_ids = jnp.arange(n_nodes, dtype=jnp.int32)
    # {0,1} incidence matrices in bf16 (exact) -> half the O(E*N) VMEM / DMA.
    ssrc = (src[:, None] == node_ids[None, :]).astype(jnp.bfloat16)     # [E, N]
    sdst_t = (dst[:, None] == node_ids[None, :]).astype(jnp.bfloat16)   # [E, N]

    def padc(w, value=0.0):
        return _pad_cols(w, dp, value)

    zeros_blk = jnp.zeros((din, dp), f32)
    # Fused node-projection weight, column blocks: [A1 | B2 | C1 | B1 | A2 | C2]
    blk_A1 = padc(params["wA1"])                                        # acts on (h, p)
    blk_A2 = padc(params["wA2"])
    blk_B1 = jnp.concatenate([padc(params["wB1"]), zeros_blk], axis=0)  # h rows only
    blk_B2 = jnp.concatenate([padc(params["wB2"]), zeros_blk], axis=0)
    blk_C1 = jnp.concatenate([zeros_blk, padc(params["wC1"])], axis=0)  # p rows only
    blk_C2 = jnp.concatenate([zeros_blk, padc(params["wC2"])], axis=0)
    w_node = jnp.concatenate([blk_A1, blk_B2, blk_C1, blk_B1, blk_A2, blk_C2], axis=1)
    b_node = jnp.concatenate(
        [padc(params[k]) for k in ("bA1", "bB2", "bC1", "bB1", "bA2", "bC2")], axis=1)

    w_b3 = padc(params["wB3"])
    b_b3 = padc(params["bB3"])
    gh = padc(params["bn_h_gamma"], 1.0)
    bh = padc(params["bn_h_beta"])
    ge = padc(params["bn_e_gamma"], 1.0)
    be = padc(params["bn_e_beta"])

    inputs = (hp, e, ssrc, sdst_t, w_node, b_node, w_b3, b_b3, gh, bh, ge, be)

    # Advisory cost estimate (matmul flops dominate).
    flops = 2 * (
        n_nodes * (2 * din) * (6 * dp)        # fused node projections
        + n_edges * din * dp                  # B3 edge projection
        + n_edges * n_nodes * (3 * dp)        # batched src gather
        + n_edges * n_nodes * dp              # dst gather (B2)
        + n_edges * n_nodes * dp              # scatter sum_sigma
        + n_edges * n_nodes * dp              # re-gather sum_sigma to edges
        + n_edges * n_nodes * (2 * dp)        # batched scatter of eta*v, eta*C2p
    )
    transcendentals = (n_edges + n_nodes) * dp + 2 * dp
    in_bytes = sum(int(np.prod(x.shape)) * x.dtype.itemsize for x in inputs)
    out_bytes = (2 * n_nodes + n_edges) * dp * 4
    cost = pl.CostEstimate(flops=flops, transcendentals=transcendentals,
                           bytes_accessed=in_bytes + out_bytes)

    vmem = pl.BlockSpec(memory_space=pltpu.MemorySpace.VMEM)
    h_pad, e_pad, p_pad = pl.pallas_call(
        ggcn_lspe_kernel,
        out_shape=(
            jax.ShapeDtypeStruct((n_nodes, dp), f32),  # h
            jax.ShapeDtypeStruct((n_edges, dp), f32),  # e
            jax.ShapeDtypeStruct((n_nodes, dp), f32),  # p
        ),
        in_specs=[vmem] * len(inputs),
        out_specs=(vmem, vmem, vmem),
        # Explicit scoped-VMEM budget (safe on v5e/v6e/v7x at this size); must
        # be re-derived / tiled when E*N grows (v7x has only 64 MiB physical).
        compiler_params=pltpu.CompilerParams(vmem_limit_bytes=32 * 1024 * 1024),
        cost_estimate=cost,
    )(*inputs)

    # strip the lane padding back to the module's output_dim
    return h_pad[:, :dout], e_pad[:, :dout], p_pad[:, :dout]


# ----------------------------------------------------------------------------
# Pure-JAX reference (gather / segment_sum path) for verification
# ----------------------------------------------------------------------------
def reference_forward(h, e, p, src, dst, params, n_nodes):
    def lin(x, w, b):
        return x @ w + b

    hp = jnp.concatenate([h, p], axis=-1)
    A1_h = lin(hp, params["wA1"], params["bA1"])
    v = lin(hp, params["wA2"], params["bA2"])
    B1_h = lin(h, params["wB1"], params["bB1"])
    B2_h = lin(h, params["wB2"], params["bB2"])
    B3_e = lin(e, params["wB3"], params["bB3"])
    C1_p = lin(p, params["wC1"], params["bC1"])
    C2_p = lin(p, params["wC2"], params["bC2"])

    hat_eta = B1_h[src] + B2_h[dst] + B3_e
    sigma = jax.nn.sigmoid(hat_eta)
    sum_sigma = jax.ops.segment_sum(sigma, dst, num_segments=n_nodes)
    eta = sigma / (sum_sigma[dst] + 1e-6)

    h_new = A1_h + jax.ops.segment_sum(eta * v[src], dst, num_segments=n_nodes)
    p_new = C1_p + jax.ops.segment_sum(eta * C2_p[src], dst, num_segments=n_nodes)
    e_new = hat_eta

    def bn(x, g, b):
        mean = jnp.mean(x, axis=0, keepdims=True)
        var = jnp.mean((x - mean) ** 2, axis=0, keepdims=True)
        return (x - mean) / jnp.sqrt(var + 1e-5) * g + b

    h_out = jax.nn.relu(bn(h_new, params["bn_h_gamma"], params["bn_h_beta"]))
    e_out = jax.nn.relu(bn(e_new, params["bn_e_gamma"], params["bn_e_beta"]))
    p_out = jnp.tanh(p_new)
    return h_out, e_out, p_out


# ----------------------------------------------------------------------------
# Main
# ----------------------------------------------------------------------------
if __name__ == "__main__":
    N, E = 16, 32          # nodes, edges
    DIN = DOUT = 32        # input_dim == output_dim

    key = jax.random.PRNGKey(0)
    keys = jax.random.split(key, 24)
    ki = iter(keys)

    h = jax.random.normal(next(ki), (N, DIN), dtype=jnp.float32)
    e = jax.random.normal(next(ki), (E, DIN), dtype=jnp.float32)
    p = jax.random.normal(next(ki), (N, DIN), dtype=jnp.float32)

    # deterministic "random graph" (replaces dgl.rand_graph)
    src = jax.random.randint(next(ki), (E,), 0, N, dtype=jnp.int32)
    dst = jax.random.randint(next(ki), (E,), 0, N, dtype=jnp.int32)

    def make_linear(k, fan_in, fan_out):
        kw, kb = jax.random.split(k)
        scale = 1.0 / np.sqrt(fan_in)
        w = jax.random.uniform(kw, (fan_in, fan_out), jnp.float32, -scale, scale)
        b = jax.random.uniform(kb, (1, fan_out), jnp.float32, -scale, scale)
        return w, b

    params = {}
    params["wA1"], params["bA1"] = make_linear(next(ki), 2 * DIN, DOUT)
    params["wA2"], params["bA2"] = make_linear(next(ki), 2 * DIN, DOUT)
    params["wB1"], params["bB1"] = make_linear(next(ki), DIN, DOUT)
    params["wB2"], params["bB2"] = make_linear(next(ki), DIN, DOUT)
    params["wB3"], params["bB3"] = make_linear(next(ki), DIN, DOUT)
    params["wC1"], params["bC1"] = make_linear(next(ki), DIN, DOUT)
    params["wC2"], params["bC2"] = make_linear(next(ki), DIN, DOUT)
    # BatchNorm default affine init: gamma=1, beta=0
    params["bn_h_gamma"] = jnp.ones((1, DOUT), jnp.float32)
    params["bn_h_beta"] = jnp.zeros((1, DOUT), jnp.float32)
    params["bn_e_gamma"] = jnp.ones((1, DOUT), jnp.float32)
    params["bn_e_beta"] = jnp.zeros((1, DOUT), jnp.float32)

    h_out, e_out, p_out = ggcn_lspe_forward(
        h, e, p, src, dst, params, n_nodes=N, n_edges=E
    )
    jax.block_until_ready((h_out, e_out, p_out))

    h_ref, e_ref, p_ref = reference_forward(h, e, p, src, dst, params, N)
    np.testing.assert_allclose(np.asarray(h_out), np.asarray(h_ref), rtol=1e-4, atol=1e-4)
    np.testing.assert_allclose(np.asarray(e_out), np.asarray(e_ref), rtol=1e-4, atol=1e-4)
    np.testing.assert_allclose(np.asarray(p_out), np.asarray(p_ref), rtol=1e-4, atol=1e-4)

    print("KERNEL_OK")
</pallas_src>

<mosaic_0001>
module attributes {stable_mosaic.version = 11 : i64} {
  func.func @ggcn_lspe_kernel(%arg0: memref<16x64xf32, #tpu.memory_space<vmem>>, %arg1: memref<32x32xf32, #tpu.memory_space<vmem>>, %arg2: memref<32x16xbf16, #tpu.memory_space<vmem>>, %arg3: memref<32x16xbf16, #tpu.memory_space<vmem>>, %arg4: memref<64x768xf32, #tpu.memory_space<vmem>>, %arg5: memref<1x768xf32, #tpu.memory_space<vmem>>, %arg6: memref<32x128xf32, #tpu.memory_space<vmem>>, %arg7: memref<1x128xf32, #tpu.memory_space<vmem>>, %arg8: memref<1x128xf32, #tpu.memory_space<vmem>>, %arg9: memref<1x128xf32, #tpu.memory_space<vmem>>, %arg10: memref<1x128xf32, #tpu.memory_space<vmem>>, %arg11: memref<1x128xf32, #tpu.memory_space<vmem>>, %arg12: memref<16x128xf32, #tpu.memory_space<vmem>>, %arg13: memref<32x128xf32, #tpu.memory_space<vmem>>, %arg14: memref<16x128xf32, #tpu.memory_space<vmem>>) attributes {dimension_semantics = [], scalar_prefetch = 0 : i64, scratch_operands = 0 : i64, tpu.core_type = #tpu.core_type<tc>} {
    %c0 = arith.constant 0 : index
    %c0_0 = arith.constant 0 : index
    %0 = vector.load %arg0[%c0, %c0_0] : memref<16x64xf32, #tpu.memory_space<vmem>>, vector<16x64xf32>
    %c0_1 = arith.constant 0 : index
    %c0_2 = arith.constant 0 : index
    %1 = vector.load %arg1[%c0_1, %c0_2] : memref<32x32xf32, #tpu.memory_space<vmem>>, vector<32x32xf32>
    %c0_3 = arith.constant 0 : index
    %c0_4 = arith.constant 0 : index
    %2 = vector.load %arg2[%c0_3, %c0_4] : memref<32x16xbf16, #tpu.memory_space<vmem>>, vector<32x16xbf16>
    %3 = arith.extf %2 : vector<32x16xbf16> to vector<32x16xf32>
    %c0_5 = arith.constant 0 : index
    %c0_6 = arith.constant 0 : index
    %4 = vector.load %arg3[%c0_5, %c0_6] : memref<32x16xbf16, #tpu.memory_space<vmem>>, vector<32x16xbf16>
    %5 = arith.extf %4 : vector<32x16xbf16> to vector<32x16xf32>
    %c0_7 = arith.constant 0 : index
    %c0_8 = arith.constant 0 : index
    %6 = vector.load %arg4[%c0_7, %c0_8] : memref<64x768xf32, #tpu.memory_space<vmem>>, vector<64x768xf32>
    %cst = arith.constant dense<0.000000e+00> : vector<16x768xf32>
    %7 = tpu.matmul %0, %6, %cst {dimension_numbers = #tpu.dot_dimension_numbers<[1], [0], [0], [1], [0, 0, 1, 1], [], []>} : vector<16x64xf32>, vector<64x768xf32>, vector<16x768xf32> -> vector<16x768xf32>
    %c0_9 = arith.constant 0 : index
    %c0_10 = arith.constant 0 : index
    %8 = vector.load %arg5[%c0_9, %c0_10] : memref<1x768xf32, #tpu.memory_space<vmem>>, vector<1x768xf32>
    %9 = vector.broadcast %8 : vector<1x768xf32> to vector<16x768xf32>
    %10 = arith.addf %7, %9 : vector<16x768xf32>
    %11 = vector.extract_strided_slice %10 {offsets = [0, 0], sizes = [16, 128], strides = [1, 1]} : vector<16x768xf32> to vector<16x128xf32>
    %12 = vector.extract_strided_slice %10 {offsets = [0, 128], sizes = [16, 128], strides = [1, 1]} : vector<16x768xf32> to vector<16x128xf32>
    %13 = vector.extract_strided_slice %10 {offsets = [0, 256], sizes = [16, 128], strides = [1, 1]} : vector<16x768xf32> to vector<16x128xf32>
    %14 = vector.extract_strided_slice %10 {offsets = [0, 384], sizes = [16, 384], strides = [1, 1]} : vector<16x768xf32> to vector<16x384xf32>
    %c0_11 = arith.constant 0 : index
    %c0_12 = arith.constant 0 : index
    %15 = vector.load %arg6[%c0_11, %c0_12] : memref<32x128xf32, #tpu.memory_space<vmem>>, vector<32x128xf32>
    %cst_13 = arith.constant dense<0.000000e+00> : vector<32x128xf32>
    %16 = tpu.matmul %1, %15, %cst_13 {dimension_numbers = #tpu.dot_dimension_numbers<[1], [0], [0], [1], [0, 0, 1, 1], [], []>} : vector<32x32xf32>, vector<32x128xf32>, vector<32x128xf32> -> vector<32x128xf32>
    %c0_14 = arith.constant 0 : index
    %c0_15 = arith.constant 0 : index
    %17 = vector.load %arg7[%c0_14, %c0_15] : memref<1x128xf32, #tpu.memory_space<vmem>>, vector<1x128xf32>
    %18 = vector.broadcast %17 : vector<1x128xf32> to vector<32x128xf32>
    %19 = arith.addf %16, %18 : vector<32x128xf32>
    %cst_16 = arith.constant dense<0.000000e+00> : vector<32x384xf32>
    %20 = tpu.matmul %3, %14, %cst_16 {dimension_numbers = #tpu.dot_dimension_numbers<[1], [0], [0], [1], [0, 0, 1, 1], [], []>} : vector<32x16xf32>, vector<16x384xf32>, vector<32x384xf32> -> vector<32x384xf32>
    %21 = vector.extract_strided_slice %20 {offsets = [0, 0], sizes = [32, 128], strides = [1, 1]} : vector<32x384xf32> to vector<32x128xf32>
    %22 = vector.extract_strided_slice %20 {offsets = [0, 128], sizes = [32, 128], strides = [1, 1]} : vector<32x384xf32> to vector<32x128xf32>
    %23 = vector.extract_strided_slice %20 {offsets = [0, 256], sizes = [32, 128], strides = [1, 1]} : vector<32x384xf32> to vector<32x128xf32>
    %cst_17 = arith.constant dense<0.000000e+00> : vector<32x128xf32>
    %24 = tpu.matmul %5, %12, %cst_17 {dimension_numbers = #tpu.dot_dimension_numbers<[1], [0], [0], [1], [0, 0, 1, 1], [], []>} : vector<32x16xf32>, vector<16x128xf32>, vector<32x128xf32> -> vector<32x128xf32>
    %25 = arith.addf %21, %24 : vector<32x128xf32>
    %26 = arith.addf %25, %19 : vector<32x128xf32>
    %27 = arith.negf %26 : vector<32x128xf32>
    %28 = math.exp %27 : vector<32x128xf32>
    %cst_18 = arith.constant 1.000000e+00 : f32
    %29 = vector.broadcast %cst_18 : f32 to vector<32x128xf32>
    %30 = arith.addf %29, %28 : vector<32x128xf32>
    %31 = arith.divf %29, %30 : vector<32x128xf32>
    %cst_19 = arith.constant dense<0.000000e+00> : vector<16x128xf32>
    %32 = tpu.matmul %5, %31, %cst_19 {dimension_numbers = #tpu.dot_dimension_numbers<[0], [0], [1], [1], [0, 1, 1, 1], [], []>} : vector<32x16xf32>, vector<32x128xf32>, vector<16x128xf32> -> vector<16x128xf32>
    %cst_20 = arith.constant dense<0.000000e+00> : vector<32x128xf32>
    %33 = tpu.matmul %5, %32, %cst_20 {dimension_numbers = #tpu.dot_dimension_numbers<[1], [0], [0], [1], [0, 0, 1, 1], [], []>} : vector<32x16xf32>, vector<16x128xf32>, vector<32x128xf32> -> vector<32x128xf32>
    %cst_21 = arith.constant 9.99999997E-7 : f32
    %34 = vector.broadcast %cst_21 : f32 to vector<32x128xf32>
    %35 = arith.addf %33, %34 : vector<32x128xf32>
    %36 = arith.divf %31, %35 : vector<32x128xf32>
    %37 = arith.mulf %36, %22 : vector<32x128xf32>
    %38 = arith.mulf %36, %23 : vector<32x128xf32>
    %39 = tpu.concatenate %37, %38 in 1 : vector<32x128xf32>, vector<32x128xf32> -> vector<32x256xf32>
    %cst_22 = arith.constant dense<0.000000e+00> : vector<16x256xf32>
    %40 = tpu.matmul %5, %39, %cst_22 {dimension_numbers = #tpu.dot_dimension_numbers<[0], [0], [1], [1], [0, 1, 1, 1], [], []>} : vector<32x16xf32>, vector<32x256xf32>, vector<16x256xf32> -> vector<16x256xf32>
    %41 = vector.extract_strided_slice %40 {offsets = [0, 0], sizes = [16, 128], strides = [1, 1]} : vector<16x256xf32> to vector<16x128xf32>
    %42 = arith.addf %11, %41 : vector<16x128xf32>
    %43 = vector.extract_strided_slice %40 {offsets = [0, 128], sizes = [16, 128], strides = [1, 1]} : vector<16x256xf32> to vector<16x128xf32>
    %44 = arith.addf %13, %43 : vector<16x128xf32>
    %c0_23 = arith.constant 0 : index
    %c0_24 = arith.constant 0 : index
    %45 = vector.load %arg8[%c0_23, %c0_24] : memref<1x128xf32, #tpu.memory_space<vmem>>, vector<1x128xf32>
    %c0_25 = arith.constant 0 : index
    %c0_26 = arith.constant 0 : index
    %46 = vector.load %arg9[%c0_25, %c0_26] : memref<1x128xf32, #tpu.memory_space<vmem>>, vector<1x128xf32>
    %cst_27 = arith.constant dense<0.000000e+00> : vector<128xf32>
    %47 = vector.multi_reduction <add>, %42, %cst_27 [0] : vector<16x128xf32> to vector<128xf32>
    %48 = vector.shape_cast %47 : vector<128xf32> to vector<1x128xf32>
    %cst_28 = arith.constant 1.600000e+01 : f32
    %49 = vector.broadcast %cst_28 : f32 to vector<1x128xf32>
    %50 = arith.divf %48, %49 : vector<1x128xf32>
    %51 = vector.broadcast %50 : vector<1x128xf32> to vector<16x128xf32>
    %52 = arith.subf %42, %51 : vector<16x128xf32>
    %53 = arith.mulf %52, %52 : vector<16x128xf32>
    %cst_29 = arith.constant dense<0.000000e+00> : vector<128xf32>
    %54 = vector.multi_reduction <add>, %53, %cst_29 [0] : vector<16x128xf32> to vector<128xf32>
    %55 = vector.shape_cast %54 : vector<128xf32> to vector<1x128xf32>
    %cst_30 = arith.constant 1.600000e+01 : f32
    %56 = vector.broadcast %cst_30 : f32 to vector<1x128xf32>
    %57 = arith.divf %55, %56 : vector<1x128xf32>
    %cst_31 = arith.constant 9.99999974E-6 : f32
    %58 = vector.broadcast %cst_31 : f32 to vector<1x128xf32>
    %59 = arith.addf %57, %58 : vector<1x128xf32>
    %60 = math.rsqrt %59 : vector<1x128xf32>
    %61 = vector.broadcast %60 : vector<1x128xf32> to vector<16x128xf32>
    %62 = arith.mulf %52, %61 : vector<16x128xf32>
    %63 = vector.broadcast %45 : vector<1x128xf32> to vector<16x128xf32>
    %64 = arith.mulf %62, %63 : vector<16x128xf32>
    %65 = vector.broadcast %46 : vector<1x128xf32> to vector<16x128xf32>
    %66 = arith.addf %64, %65 : vector<16x128xf32>
    %cst_32 = arith.constant 0.000000e+00 : f32
    %67 = vector.broadcast %cst_32 : f32 to vector<16x128xf32>
    %68 = arith.maximumf %66, %67 : vector<16x128xf32>
    %c0_33 = arith.constant 0 : index
    %c0_34 = arith.constant 0 : index
    %69 = vector.load %arg12[%c0_33, %c0_34] : memref<16x128xf32, #tpu.memory_space<vmem>>, vector<16x128xf32>
    tpu.vector_store %arg12[%c0_33, %c0_34], %68 {strides = array<i32>} : memref<16x128xf32, #tpu.memory_space<vmem>>, vector<16x128xf32>,
    %c0_35 = arith.constant 0 : index
    %c0_36 = arith.constant 0 : index
    %70 = vector.load %arg10[%c0_35, %c0_36] : memref<1x128xf32, #tpu.memory_space<vmem>>, vector<1x128xf32>
    %c0_37 = arith.constant 0 : index
    %c0_38 = arith.constant 0 : index
    %71 = vector.load %arg11[%c0_37, %c0_38] : memref<1x128xf32, #tpu.memory_space<vmem>>, vector<1x128xf32>
    %cst_39 = arith.constant dense<0.000000e+00> : vector<128xf32>
    %72 = vector.multi_reduction <add>, %26, %cst_39 [0] : vector<32x128xf32> to vector<128xf32>
    %73 = vector.shape_cast %72 : vector<128xf32> to vector<1x128xf32>
    %cst_40 = arith.constant 3.200000e+01 : f32
    %74 = vector.broadcast %cst_40 : f32 to vector<1x128xf32>
    %75 = arith.divf %73, %74 : vector<1x128xf32>
    %76 = vector.broadcast %75 : vector<1x128xf32> to vector<32x128xf32>
    %77 = arith.subf %26, %76 : vector<32x128xf32>
    %78 = arith.mulf %77, %77 : vector<32x128xf32>
    %cst_41 = arith.constant dense<0.000000e+00> : vector<128xf32>
    %79 = vector.multi_reduction <add>, %78, %cst_41 [0] : vector<32x128xf32> to vector<128xf32>
    %80 = vector.shape_cast %79 : vector<128xf32> to vector<1x128xf32>
    %cst_42 = arith.constant 3.200000e+01 : f32
    %81 = vector.broadcast %cst_42 : f32 to vector<1x128xf32>
    %82 = arith.divf %80, %81 : vector<1x128xf32>
    %cst_43 = arith.constant 9.99999974E-6 : f32
    %83 = vector.broadcast %cst_43 : f32 to vector<1x128xf32>
    %84 = arith.addf %82, %83 : vector<1x128xf32>
    %85 = math.rsqrt %84 : vector<1x128xf32>
    %86 = vector.broadcast %85 : vector<1x128xf32> to vector<32x128xf32>
    %87 = arith.mulf %77, %86 : vector<32x128xf32>
    %88 = vector.broadcast %70 : vector<1x128xf32> to vector<32x128xf32>
    %89 = arith.mulf %87, %88 : vector<32x128xf32>
    %90 = vector.broadcast %71 : vector<1x128xf32> to vector<32x128xf32>
    %91 = arith.addf %89, %90 : vector<32x128xf32>
    %cst_44 = arith.constant 0.000000e+00 : f32
    %92 = vector.broadcast %cst_44 : f32 to vector<32x128xf32>
    %93 = arith.maximumf %91, %92 : vector<32x128xf32>
    %c0_45 = arith.constant 0 : index
    %c0_46 = arith.constant 0 : index
    %94 = vector.load %arg13[%c0_45, %c0_46] : memref<32x128xf32, #tpu.memory_space<vmem>>, vector<32x128xf32>
    tpu.vector_store %arg13[%c0_45, %c0_46], %93 {strides = array<i32>} : memref<32x128xf32, #tpu.memory_space<vmem>>, vector<32x128xf32>,
    %95 = math.tanh %44 : vector<16x128xf32>
    %c0_47 = arith.constant 0 : index
    %c0_48 = arith.constant 0 : index
    %96 = vector.load %arg14[%c0_47, %c0_48] : memref<16x128xf32, #tpu.memory_space<vmem>>, vector<16x128xf32>
    tpu.vector_store %arg14[%c0_47, %c0_48], %95 {strides = array<i32>} : memref<16x128xf32, #tpu.memory_space<vmem>>, vector<16x128xf32>,
    return
  }
}

</mosaic_0001>

<llo_original>
// kernel: ggcn_lspe_forward.1
$region0: #{ggcn_lspe_forward.1}
  #allocation0 [shape = 'u32[]', space=smem, size = 0x4, offset = 0x4, fixed_abs, tag = 'smem constant byte address 0x4 - core index']
  #allocation1 [shape = 'u32[72,128]{1,0:T(1,128)}', space=vmem, size = 0x9000, scoped, tag = 'internal scratch']
  %s0 = inlined_call_operand.vmem [shape: f32[16,64], index: 0, kind: input, shape index: {}]
  %s1 = inlined_call_operand.vmem [shape: f32[32,32], index: 1, kind: input, shape index: {}]
  %s2 = inlined_call_operand.vmem [shape: bf16[32,16], index: 2, kind: input, shape index: {}]
  %s3 = inlined_call_operand.vmem [shape: bf16[32,16], index: 3, kind: input, shape index: {}]
  %s4 = inlined_call_operand.vmem [shape: f32[64,768], index: 4, kind: input, shape index: {}]
  %s5 = inlined_call_operand.vmem [shape: f32[1,768], index: 5, kind: input, shape index: {}]
  %s6 = inlined_call_operand.vmem [shape: f32[32,128], index: 6, kind: input, shape index: {}]
  %s7 = inlined_call_operand.vmem [shape: f32[1,128], index: 7, kind: input, shape index: {}]
  %s8 = inlined_call_operand.vmem [shape: f32[1,128], index: 8, kind: input, shape index: {}]
  %s9 = inlined_call_operand.vmem [shape: f32[1,128], index: 9, kind: input, shape index: {}]
  %s10 = inlined_call_operand.vmem [shape: f32[1,128], index: 10, kind: input, shape index: {}]
  %s11 = inlined_call_operand.vmem [shape: f32[1,128], index: 11, kind: input, shape index: {}]
  %s12 = inlined_call_operand.hbm [shape: f32[16,128], index: 12, kind: output, shape index: {0}]
  %s13 = inlined_call_operand.hbm [shape: f32[32,128], index: 13, kind: output, shape index: {1}]
  %s14 = inlined_call_operand.hbm [shape: f32[16,128], index: 14, kind: output, shape index: {2}]
  %15 = xla_tuple %s12, %s13, %s14
  %s16 = sld [smem:[#allocation0]]
  $region74: #{ggcn_lspe_forward.1} parent=0
    _
  %s18 = ssub.s32 1, %s16
  %s19 = scalar_select 0, %s18, %s16
  $region1: #{ggcn_lspe_forward.1} parent=0
    #allocation2 [shape = 'u8[8192]{0}', space=vmem, size = 0x2000, scoped, tag = 'output window, operand 0, single buffered']
    #allocation3 [shape = 's32[1]{0}', space=sflag, size = 0x4, scoped, tag = 'scoped memory for ggcn_lspe_forward.1']
    #allocation4 [shape = 'u8[16384]{0}', space=vmem, size = 0x4000, scoped, tag = 'output window, operand 1, single buffered']
    #allocation5 [shape = 's32[1]{0}', space=sflag, size = 0x4, scoped, tag = 'scoped memory for ggcn_lspe_forward.1']
    #allocation6 [shape = 'u8[8192]{0}', space=vmem, size = 0x2000, scoped, tag = 'output window, operand 2, single buffered']
    %20 = vsyncpa [#allocation3], 0
    %21 = vsyncpa [#allocation5], 0
    // Predicated region
    $region2: #{ggcn_lspe_forward.1} parent=1 // pred_check
      _
    $region3: #{ggcn_lspe_forward.1} parent=1 // pred_check_branch
      %23 = sbr.rel (0) target = $region5
    $region4: #{ggcn_lspe_forward.1} parent=1 // pred_region
      _
    $region5: #{ggcn_lspe_forward.1} parent=1 // pred_fallthru
      _
    // Predicated region
    $region6: #{ggcn_lspe_forward.1} parent=1 // pred_check
      _
    $region7: #{ggcn_lspe_forward.1} parent=1 // pred_check_branch
      %25 = sbr.rel (0) target = $region9
    $region8: #{ggcn_lspe_forward.1} parent=1 // pred_region
      _
    $region9: #{ggcn_lspe_forward.1} parent=1 // pred_fallthru
      _
    // Predicated region
    $region10: #{ggcn_lspe_forward.1} parent=1 // pred_check
      _
    $region11: #{ggcn_lspe_forward.1} parent=1 // pred_check_branch
      %27 = sbr.rel (0) target = $region13
    $region12: #{ggcn_lspe_forward.1} parent=1 // pred_region
      _
    $region13: #{ggcn_lspe_forward.1} parent=1 // pred_fallthru
      _
    // Predicated region
    $region14: #{ggcn_lspe_forward.1} parent=1 // pred_check
      _
    $region15: #{ggcn_lspe_forward.1} parent=1 // pred_check_branch
      %29 = sbr.rel (0) target = $region17
    $region16: #{ggcn_lspe_forward.1} parent=1 // pred_region
      _
    $region17: #{ggcn_lspe_forward.1} parent=1 // pred_fallthru
      _
    // Predicated region
    $region18: #{ggcn_lspe_forward.1} parent=1 // pred_check
      _
    $region19: #{ggcn_lspe_forward.1} parent=1 // pred_check_branch
      %31 = sbr.rel (0) target = $region21
    $region20: #{ggcn_lspe_forward.1} parent=1 // pred_region
      _
    $region21: #{ggcn_lspe_forward.1} parent=1 // pred_fallthru
      _
    // Predicated region
    $region22: #{ggcn_lspe_forward.1} parent=1 // pred_check
      _
    $region23: #{ggcn_lspe_forward.1} parent=1 // pred_check_branch
      %33 = sbr.rel (0) target = $region25
    $region24: #{ggcn_lspe_forward.1} parent=1 // pred_region
      _
    $region25: #{ggcn_lspe_forward.1} parent=1 // pred_fallthru
      _
    // Predicated region
    $region26: #{ggcn_lspe_forward.1} parent=1 // pred_check
      _
    $region27: #{ggcn_lspe_forward.1} parent=1 // pred_check_branch
      %35 = sbr.rel (0) target = $region29
    $region28: #{ggcn_lspe_forward.1} parent=1 // pred_region
      _
    $region29: #{ggcn_lspe_forward.1} parent=1 // pred_fallthru
      _
    // Predicated region
    $region30: #{ggcn_lspe_forward.1} parent=1 // pred_check
      _
    $region31: #{ggcn_lspe_forward.1} parent=1 // pred_check_branch
      %37 = sbr.rel (0) target = $region33
    $region32: #{ggcn_lspe_forward.1} parent=1 // pred_region
      _
    $region33: #{ggcn_lspe_forward.1} parent=1 // pred_fallthru
      _
    // Predicated region
    $region34: #{ggcn_lspe_forward.1} parent=1 // pred_check
      _
    $region35: #{ggcn_lspe_forward.1} parent=1 // pred_check_branch
      %39 = sbr.rel (0) target = $region37
    $region36: #{ggcn_lspe_forward.1} parent=1 // pred_region
      _
    $region37: #{ggcn_lspe_forward.1} parent=1 // pred_fallthru
      _
    // Predicated region
    $region38: #{ggcn_lspe_forward.1} parent=1 // pred_check
      _
    $region39: #{ggcn_lspe_forward.1} parent=1 // pred_check_branch
      %41 = sbr.rel (0) target = $region41
    $region40: #{ggcn_lspe_forward.1} parent=1 // pred_region
      _
    $region41: #{ggcn_lspe_forward.1} parent=1 // pred_fallthru
      _
    // Predicated region
    $region42: #{ggcn_lspe_forward.1} parent=1 // pred_check
      _
    $region43: #{ggcn_lspe_forward.1} parent=1 // pred_check_branch
      %43 = sbr.rel (0) target = $region45
    $region44: #{ggcn_lspe_forward.1} parent=1 // pred_region
      _
    $region45: #{ggcn_lspe_forward.1} parent=1 // pred_fallthru
      _
    // Predicated region
    $region46: #{ggcn_lspe_forward.1} parent=1 // pred_check
      _
    $region47: #{ggcn_lspe_forward.1} parent=1 // pred_check_branch
      %45 = sbr.rel (0) target = $region49
    $region48: #{ggcn_lspe_forward.1} parent=1 // pred_region
      _
    $region49: #{ggcn_lspe_forward.1} parent=1 // pred_fallthru
      _
    %v46 = vld [vmem:[%s0] sm:$0xff]
    %v47 = vld [vmem:[%s0 + $0x8] sm:$0xff]
    %v48 = vld [vmem:[%s1] sm:$0xff]
    %v49 = vld [vmem:[%s1 + $0x8] sm:$0xff]
    %v50 = vld [vmem:[%s1 + $0x10] sm:$0xff]
    %v51 = vld [vmem:[%s1 + $0x18] sm:$0xff]
    %v52 = vld [vmem:[%s2] sm:$0xf]
    %v53 = vld [vmem:[%s2 + $0x4] sm:$0xf]
    %v54 = vld [vmem:[%s2 + $0x8] sm:$0xf]
    %v55 = vld [vmem:[%s2 + $0xc] sm:$0xf]
    %v56 = vunpack.c.l.bf16 %v52
    %v57 = vunpack.c.l.bf16 %v53
    %v58 = vunpack.c.l.bf16 %v54
    %v59 = vunpack.c.l.bf16 %v55
    %v60 = vld [vmem:[%s3] sm:$0xf]
    %v61 = vld [vmem:[%s3 + $0x4] sm:$0xf]
    %v62 = vld [vmem:[%s3 + $0x8] sm:$0xf]
    %v63 = vld [vmem:[%s3 + $0xc] sm:$0xf]
    %v64 = vunpack.c.l.bf16 %v60
    %v65 = vunpack.c.l.bf16 %v61
    %v66 = vunpack.c.l.bf16 %v62
    %v67 = vunpack.c.l.bf16 %v63
    %v68 = vld [vmem:[%s4] sm:$0xff]
    %v69 = vld [vmem:[%s4 + $0x8] sm:$0xff]
    %v70 = vld [vmem:[%s4 + $0x10] sm:$0xff]
    %v71 = vld [vmem:[%s4 + $0x18] sm:$0xff]
    %v72 = vld [vmem:[%s4 + $0x20] sm:$0xff]
    %v73 = vld [vmem:[%s4 + $0x28] sm:$0xff]
    %v74 = vld [vmem:[%s4 + $0x30] sm:$0xff]
    %v75 = vld [vmem:[%s4 + $0x38] sm:$0xff]
    %v76 = vld [vmem:[%s4 + $0x40] sm:$0xff]
    %v77 = vld [vmem:[%s4 + $0x48] sm:$0xff]
    %v78 = vld [vmem:[%s4 + $0x50] sm:$0xff]
    %v79 = vld [vmem:[%s4 + $0x58] sm:$0xff]
    %v80 = vld [vmem:[%s4 + $0x60] sm:$0xff]
    %v81 = vld [vmem:[%s4 + $0x68] sm:$0xff]
    %v82 = vld [vmem:[%s4 + $0x70] sm:$0xff]
    %v83 = vld [vmem:[%s4 + $0x78] sm:$0xff]
    %v84 = vld [vmem:[%s4 + $0x80] sm:$0xff]
    %v85 = vld [vmem:[%s4 + $0x88] sm:$0xff]
    %v86 = vld [vmem:[%s4 + $0x90] sm:$0xff]
    %v87 = vld [vmem:[%s4 + $0x98] sm:$0xff]
    %v88 = vld [vmem:[%s4 + $0xa0] sm:$0xff]
    %v89 = vld [vmem:[%s4 + $0xa8] sm:$0xff]
    %v90 = vld [vmem:[%s4 + $0xb0] sm:$0xff]
    %v91 = vld [vmem:[%s4 + $0xb8] sm:$0xff]
    %v92 = vld [vmem:[%s4 + $0xc0] sm:$0xff]
    %v93 = vld [vmem:[%s4 + $0xc8] sm:$0xff]
    %v94 = vld [vmem:[%s4 + $0xd0] sm:$0xff]
    %v95 = vld [vmem:[%s4 + $0xd8] sm:$0xff]
    %v96 = vld [vmem:[%s4 + $0xe0] sm:$0xff]
    %v97 = vld [vmem:[%s4 + $0xe8] sm:$0xff]
    %v98 = vld [vmem:[%s4 + $0xf0] sm:$0xff]
    %v99 = vld [vmem:[%s4 + $0xf8] sm:$0xff]
    %v100 = vld [vmem:[%s4 + $0x100] sm:$0xff]
    %v101 = vld [vmem:[%s4 + $0x108] sm:$0xff]
    %v102 = vld [vmem:[%s4 + $0x110] sm:$0xff]
    %v103 = vld [vmem:[%s4 + $0x118] sm:$0xff]
    %v104 = vld [vmem:[%s4 + $0x120] sm:$0xff]
    %v105 = vld [vmem:[%s4 + $0x128] sm:$0xff]
    %v106 = vld [vmem:[%s4 + $0x130] sm:$0xff]
    %v107 = vld [vmem:[%s4 + $0x138] sm:$0xff]
    %v108 = vld [vmem:[%s4 + $0x140] sm:$0xff]
    %v109 = vld [vmem:[%s4 + $0x148] sm:$0xff]
    %v110 = vld [vmem:[%s4 + $0x150] sm:$0xff]
    %v111 = vld [vmem:[%s4 + $0x158] sm:$0xff]
    %v112 = vld [vmem:[%s4 + $0x160] sm:$0xff]
    %v113 = vld [vmem:[%s4 + $0x168] sm:$0xff]
    %v114 = vld [vmem:[%s4 + $0x170] sm:$0xff]
    %v115 = vld [vmem:[%s4 + $0x178] sm:$0xff]
    %v116 = vld [vmem:[%s5] sm:$0x3f]
    %v118 = vperm.slane %v116, 0
    %v119 = vperm.slane %v116, 1
    %v120 = vperm.slane %v116, 2
    %v121 = vperm.slane %v116, 3
    %v122 = vperm.slane %v116, 4
    %v123 = vperm.slane %v116, 5
    %vm130 = vcmask 523264
    %v132 = vsel %vm130, %v46, 0
    %v135 = vsel %vm130, %v47, 0
    %137 = vmatpush.msra.mxu0 0.0
    %138 = vmatpush.msra.mxu0 0.0
    %139 = vmatpush.msra.mxu0 0.0
    %140 = vmatpush.msra.mxu0 0.0
    %141 = vmatpush.msra.mxu0 0.0
    %142 = vmatpush.msra.mxu0 0.0
    %143 = vmatpush.msra.mxu0 0.0
    %144 = vmatpush.msra.mxu0 0.0
    %145 = vmatpush.msra.mxu0 %v110
    %146 = vmatpush.msra.mxu0 %v104
    %147 = vmatpush.msra.mxu0 %v98
    %148 = vmatpush.msra.mxu0 %v92
    %149 = vmatpush.msra.mxu0 %v86
    %150 = vmatpush.msra.mxu0 %v80
    %151 = vmatpush.msra.mxu0 %v74
    %152 = vmatpush.msra.mxu0 %v68
    %153 = vmatmul.f32.gmra.mxu0 %v132
    %v154 = vpop.f32.mrf.mxu0
    %v155 = vadd.f32 %v118, %v154
    %156 = vmatmul.f32.gmra.mxu0 %v135
    %v157 = vpop.f32.mrf.mxu0
    %v158 = vadd.f32 %v118, %v157
    %159 = vdwg.mxu0
    %160 = vmatpush.msra.mxu0 0.0
    %161 = vmatpush.msra.mxu0 0.0
    %162 = vmatpush.msra.mxu0 0.0
    %163 = vmatpush.msra.mxu0 0.0
    %164 = vmatpush.msra.mxu0 0.0
    %165 = vmatpush.msra.mxu0 0.0
    %166 = vmatpush.msra.mxu0 0.0
    %167 = vmatpush.msra.mxu0 0.0
    %168 = vmatpush.msra.mxu0 %v111
    %169 = vmatpush.msra.mxu0 %v105
    %170 = vmatpush.msra.mxu0 %v99
    %171 = vmatpush.msra.mxu0 %v93
    %172 = vmatpush.msra.mxu0 %v87
    %173 = vmatpush.msra.mxu0 %v81
    %174 = vmatpush.msra.mxu0 %v75
    %175 = vmatpush.msra.mxu0 %v69
    %176 = vmatmul.f32.gmra.mxu0 %v132
    %v177 = vpop.f32.mrf.mxu0
    %v178 = vadd.f32 %v119, %v177
    %179 = vmatmul.f32.gmra.mxu0 %v135
    %v180 = vpop.f32.mrf.mxu0
    %v181 = vadd.f32 %v119, %v180
    %182 = vdwg.mxu0
    %183 = vmatpush.msra.mxu0 0.0
    %184 = vmatpush.msra.mxu0 0.0
    %185 = vmatpush.msra.mxu0 0.0
    %186 = vmatpush.msra.mxu0 0.0
    %187 = vmatpush.msra.mxu0 0.0
    %188 = vmatpush.msra.mxu0 0.0
    %189 = vmatpush.msra.mxu0 0.0
    %190 = vmatpush.msra.mxu0 0.0
    %191 = vmatpush.msra.mxu0 %v112
    %192 = vmatpush.msra.mxu0 %v106
    %193 = vmatpush.msra.mxu0 %v100
    %194 = vmatpush.msra.mxu0 %v94
    %195 = vmatpush.msra.mxu0 %v88
    %196 = vmatpush.msra.mxu0 %v82
    %197 = vmatpush.msra.mxu0 %v76
    %198 = vmatpush.msra.mxu0 %v70
    %199 = vmatmul.f32.gmra.mxu0 %v132
    %v200 = vpop.f32.mrf.mxu0
    %v201 = vadd.f32 %v120, %v200
    %202 = vmatmul.f32.gmra.mxu0 %v135
    %v203 = vpop.f32.mrf.mxu0
    %v204 = vadd.f32 %v120, %v203
    %205 = vdwg.mxu0
    %206 = vmatpush.msra.mxu0 0.0
    %207 = vmatpush.msra.mxu0 0.0
    %208 = vmatpush.msra.mxu0 0.0
    %209 = vmatpush.msra.mxu0 0.0
    %210 = vmatpush.msra.mxu0 0.0
    %211 = vmatpush.msra.mxu0 0.0
    %212 = vmatpush.msra.mxu0 0.0
    %213 = vmatpush.msra.mxu0 0.0
    %214 = vmatpush.msra.mxu0 %v113
    %215 = vmatpush.msra.mxu0 %v107
    %216 = vmatpush.msra.mxu0 %v101
    %217 = vmatpush.msra.mxu0 %v95
    %218 = vmatpush.msra.mxu0 %v89
    %219 = vmatpush.msra.mxu0 %v83
    %220 = vmatpush.msra.mxu0 %v77
    %221 = vmatpush.msra.mxu0 %v71
    %222 = vmatmul.f32.gmra.mxu0 %v132
    %v223 = vpop.f32.mrf.mxu0
    %v224 = vadd.f32 %v121, %v223
    %225 = vmatmul.f32.gmra.mxu0 %v135
    %v226 = vpop.f32.mrf.mxu0
    %v227 = vadd.f32 %v121, %v226
    %228 = vdwg.mxu0
    %229 = vmatpush.msra.mxu0 0.0
    %230 = vmatpush.msra.mxu0 0.0
    %231 = vmatpush.msra.mxu0 0.0
    %232 = vmatpush.msra.mxu0 0.0
    %233 = vmatpush.msra.mxu0 0.0
    %234 = vmatpush.msra.mxu0 0.0
    %235 = vmatpush.msra.mxu0 0.0
    %236 = vmatpush.msra.mxu0 0.0
    %237 = vmatpush.msra.mxu0 %v114
    %238 = vmatpush.msra.mxu0 %v108
    %239 = vmatpush.msra.mxu0 %v102
    %240 = vmatpush.msra.mxu0 %v96
    %241 = vmatpush.msra.mxu0 %v90
    %242 = vmatpush.msra.mxu0 %v84
    %243 = vmatpush.msra.mxu0 %v78
    %244 = vmatpush.msra.mxu0 %v72
    %245 = vmatmul.f32.gmra.mxu0 %v132
    %v246 = vpop.f32.mrf.mxu0
    %v247 = vadd.f32 %v122, %v246
    %248 = vmatmul.f32.gmra.mxu0 %v135
    %v249 = vpop.f32.mrf.mxu0
    %v250 = vadd.f32 %v122, %v249
    %251 = vdwg.mxu0
    %252 = vmatpush.msra.mxu0 0.0
    %253 = vmatpush.msra.mxu0 0.0
    %254 = vmatpush.msra.mxu0 0.0
    %255 = vmatpush.msra.mxu0 0.0
    %256 = vmatpush.msra.mxu0 0.0
    %257 = vmatpush.msra.mxu0 0.0
    %258 = vmatpush.msra.mxu0 0.0
    %259 = vmatpush.msra.mxu0 0.0
    %260 = vmatpush.msra.mxu0 %v115
    %261 = vmatpush.msra.mxu0 %v109
    %262 = vmatpush.msra.mxu0 %v103
    %263 = vmatpush.msra.mxu0 %v97
    %264 = vmatpush.msra.mxu0 %v91
    %265 = vmatpush.msra.mxu0 %v85
    %266 = vmatpush.msra.mxu0 %v79
    %267 = vmatpush.msra.mxu0 %v73
    %268 = vmatmul.f32.gmra.mxu0 %v132
    %v269 = vpop.f32.mrf.mxu0
    %v270 = vadd.f32 %v123, %v269
    %271 = vmatmul.f32.gmra.mxu0 %v135
    %v272 = vpop.f32.mrf.mxu0
    %v273 = vadd.f32 %v123, %v272
    %274 = vdwg.mxu0
    %v275 = vld [vmem:[%s6] sm:$0xff]
    %v276 = vld [vmem:[%s6 + $0x8] sm:$0xff]
    %v277 = vld [vmem:[%s6 + $0x10] sm:$0xff]
    %v278 = vld [vmem:[%s6 + $0x18] sm:$0xff]
    %v279 = vld [vmem:[%s7] sm:$0x1]
    %v281 = vperm.slane %v279, 0
    %vm283 = vcmask 261120
    %v285 = vsel %vm283, %v48, 0
    %v288 = vsel %vm283, %v49, 0
    %v291 = vsel %vm283, %v50, 0
    %v294 = vsel %vm283, %v51, 0
    %296 = vmatpush.msra.mxu0 0.0
    %297 = vmatpush.msra.mxu0 0.0
    %298 = vmatpush.msra.mxu0 0.0
    %299 = vmatpush.msra.mxu0 0.0
    %300 = vmatpush.msra.mxu0 0.0
    %301 = vmatpush.msra.mxu0 0.0
    %302 = vmatpush.msra.mxu0 0.0
    %303 = vmatpush.msra.mxu0 0.0
    %304 = vmatpush.msra.mxu0 0.0
    %305 = vmatpush.msra.mxu0 0.0
    %306 = vmatpush.msra.mxu0 0.0
    %307 = vmatpush.msra.mxu0 0.0
    %308 = vmatpush.msra.mxu0 %v278
    %309 = vmatpush.msra.mxu0 %v277
    %310 = vmatpush.msra.mxu0 %v276
    %311 = vmatpush.msra.mxu0 %v275
    %312 = vmatmul.f32.gmra.mxu0 %v285
    %v313 = vpop.f32.mrf.mxu0
    %v314 = vadd.f32 %v281, %v313
    %315 = vmatmul.f32.gmra.mxu0 %v288
    %v316 = vpop.f32.mrf.mxu0
    %v317 = vadd.f32 %v281, %v316
    %318 = vmatmul.f32.gmra.mxu0 %v291
    %v319 = vpop.f32.mrf.mxu0
    %v320 = vadd.f32 %v281, %v319
    %321 = vmatmul.f32.gmra.mxu0 %v294
    %v322 = vpop.f32.mrf.mxu0
    %v323 = vadd.f32 %v281, %v322
    %324 = vdwg.mxu0
    %vm325 = vcmask 130048
    %v327 = vsel %vm325, %v56, 0
    %v330 = vsel %vm325, %v57, 0
    %v333 = vsel %vm325, %v58, 0
    %v336 = vsel %vm325, %v59, 0
    %338 = vmatpush.msra.mxu0 0.0
    %339 = vmatpush.msra.mxu0 0.0
    %340 = vmatpush.msra.mxu0 0.0
    %341 = vmatpush.msra.mxu0 0.0
    %342 = vmatpush.msra.mxu0 0.0
    %343 = vmatpush.msra.mxu0 0.0
    %344 = vmatpush.msra.mxu0 0.0
    %345 = vmatpush.msra.mxu0 0.0
    %346 = vmatpush.msra.mxu0 0.0
    %347 = vmatpush.msra.mxu0 0.0
    %348 = vmatpush.msra.mxu0 0.0
    %349 = vmatpush.msra.mxu0 0.0
    %350 = vmatpush.msra.mxu0 0.0
    %351 = vmatpush.msra.mxu0 0.0
    %352 = vmatpush.msra.mxu0 %v227
    %353 = vmatpush.msra.mxu0 %v224
    %354 = vmatmul.f32.gmra.mxu0 %v327
    %v355 = vpop.f32.mrf.mxu0
    %v356 = vadd.f32 0.0, %v355
    %357 = vmatmul.f32.gmra.mxu0 %v330
    %v358 = vpop.f32.mrf.mxu0
    %v359 = vadd.f32 0.0, %v358
    %360 = vmatmul.f32.gmra.mxu0 %v333
    %v361 = vpop.f32.mrf.mxu0
    %v362 = vadd.f32 0.0, %v361
    %363 = vmatmul.f32.gmra.mxu0 %v336
    %v364 = vpop.f32.mrf.mxu0
    %v365 = vadd.f32 0.0, %v364
    %366 = vdwg.mxu0
    %367 = vmatpush.msra.mxu0 0.0
    %368 = vmatpush.msra.mxu0 0.0
    %369 = vmatpush.msra.mxu0 0.0
    %370 = vmatpush.msra.mxu0 0.0
    %371 = vmatpush.msra.mxu0 0.0
    %372 = vmatpush.msra.mxu0 0.0
    %373 = vmatpush.msra.mxu0 0.0
    %374 = vmatpush.msra.mxu0 0.0
    %375 = vmatpush.msra.mxu0 0.0
    %376 = vmatpush.msra.mxu0 0.0
    %377 = vmatpush.msra.mxu0 0.0
    %378 = vmatpush.msra.mxu0 0.0
    %379 = vmatpush.msra.mxu0 0.0
    %380 = vmatpush.msra.mxu0 0.0
    %381 = vmatpush.msra.mxu0 %v250
    %382 = vmatpush.msra.mxu0 %v247
    %383 = vmatmul.f32.gmra.mxu0 %v327
    %v384 = vpop.f32.mrf.mxu0
    %v385 = vadd.f32 0.0, %v384
    %386 = vmatmul.f32.gmra.mxu0 %v330
    %v387 = vpop.f32.mrf.mxu0
    %v388 = vadd.f32 0.0, %v387
    %389 = vmatmul.f32.gmra.mxu0 %v333
    %v390 = vpop.f32.mrf.mxu0
    %v391 = vadd.f32 0.0, %v390
    %392 = vmatmul.f32.gmra.mxu0 %v336
    %v393 = vpop.f32.mrf.mxu0
    %v394 = vadd.f32 0.0, %v393
    %395 = vdwg.mxu0
    %396 = vmatpush.msra.mxu0 0.0
    %397 = vmatpush.msra.mxu0 0.0
    %398 = vmatpush.msra.mxu0 0.0
    %399 = vmatpush.msra.mxu0 0.0
    %400 = vmatpush.msra.mxu0 0.0
    %401 = vmatpush.msra.mxu0 0.0
    %402 = vmatpush.msra.mxu0 0.0
    %403 = vmatpush.msra.mxu0 0.0
    %404 = vmatpush.msra.mxu0 0.0
    %405 = vmatpush.msra.mxu0 0.0
    %406 = vmatpush.msra.mxu0 0.0
    %407 = vmatpush.msra.mxu0 0.0
    %408 = vmatpush.msra.mxu0 0.0
    %409 = vmatpush.msra.mxu0 0.0
    %410 = vmatpush.msra.mxu0 %v273
    %411 = vmatpush.msra.mxu0 %v270
    %412 = vmatmul.f32.gmra.mxu0 %v327
    %v413 = vpop.f32.mrf.mxu0
    %v414 = vadd.f32 0.0, %v413
    %415 = vmatmul.f32.gmra.mxu0 %v330
    %v416 = vpop.f32.mrf.mxu0
    %v417 = vadd.f32 0.0, %v416
    %418 = vmatmul.f32.gmra.mxu0 %v333
    %v419 = vpop.f32.mrf.mxu0
    %v420 = vadd.f32 0.0, %v419
    %421 = vmatmul.f32.gmra.mxu0 %v336
    %v422 = vpop.f32.mrf.mxu0
    %v423 = vadd.f32 0.0, %v422
    %424 = vdwg.mxu0
    %v426 = vsel %vm325, %v64, 0
    %v429 = vsel %vm325, %v65, 0
    %v432 = vsel %vm325, %v66, 0
    %v435 = vsel %vm325, %v67, 0
    %437 = vmatpush.msra.mxu0 0.0
    %438 = vmatpush.msra.mxu0 0.0
    %439 = vmatpush.msra.mxu0 0.0
    %440 = vmatpush.msra.mxu0 0.0
    %441 = vmatpush.msra.mxu0 0.0
    %442 = vmatpush.msra.mxu0 0.0
    %443 = vmatpush.msra.mxu0 0.0
    %444 = vmatpush.msra.mxu0 0.0
    %445 = vmatpush.msra.mxu0 0.0
    %446 = vmatpush.msra.mxu0 0.0
    %447 = vmatpush.msra.mxu0 0.0
    %448 = vmatpush.msra.mxu0 0.0
    %449 = vmatpush.msra.mxu0 0.0
    %450 = vmatpush.msra.mxu0 0.0
    %451 = vmatpush.msra.mxu0 %v181
    %452 = vmatpush.msra.mxu0 %v178
    %453 = vmatmul.f32.gmra.mxu0 %v426
    %v454 = vpop.f32.mrf.mxu0
    %v455 = vadd.f32 0.0, %v454
    %456 = vmatmul.f32.gmra.mxu0 %v429
    %v457 = vpop.f32.mrf.mxu0
    %v458 = vadd.f32 0.0, %v457
    %459 = vmatmul.f32.gmra.mxu0 %v432
    %v460 = vpop.f32.mrf.mxu0
    %v461 = vadd.f32 0.0, %v460
    %462 = vmatmul.f32.gmra.mxu0 %v435
    %v463 = vpop.f32.mrf.mxu0
    %v464 = vadd.f32 0.0, %v463
    %465 = vdwg.mxu0
    %v466 = vadd.f32 %v356, %v455
    %v467 = vadd.f32 %v359, %v458
    %v468 = vadd.f32 %v362, %v461
    %v469 = vadd.f32 %v365, %v464
    %v470 = vadd.f32 %v466, %v314
    %v471 = vadd.f32 %v467, %v317
    %v472 = vadd.f32 %v468, %v320
    %v473 = vadd.f32 %v469, %v323
    %v474 = vxor.u32 %v470, 2147483648
    %v475 = vxor.u32 %v471, 2147483648
    %v476 = vxor.u32 %v472, 2147483648
    %v477 = vxor.u32 %v473, 2147483648
    %v478 = vmul.f32 %v474, 1.442695
    %v479 = vpow.pop %v478
    %v480 = vmul.f32 %v475, 1.442695
    %v481 = vpow.pop %v480
    %v482 = vmul.f32 %v476, 1.442695
    %v483 = vpow.pop %v482
    %v484 = vmul.f32 %v477, 1.442695
    %v485 = vpow.pop %v484
    %v486 = vadd.f32 %v479, 1.0
    %v487 = vadd.f32 %v481, 1.0
    %v488 = vadd.f32 %v483, 1.0
    %v489 = vadd.f32 %v485, 1.0
    %v490 = vrcp.pop %v486
    %v491 = vmul.f32 %v486, %v490
    %v492 = vsub.f32 1.0, %v491
    %v493 = vmul.f32 %v490, %v492
    %v494 = vadd.f32 %v490, %v493
    %vm495 = vweird.f32 %v486
    %vm496 = vweird.f32 %v490
    %vm497 = vmor %vm495, %vm496
    %v498 = vsel %vm497, %v490, %v494
    %v499 = vand.u32 2147483647, %v486
    %vm500 = vcmp.eq.f32.partialorder %v499, 8.507059e+37
    %v501 = vand.u32 %v486, 2147483648
    %v502 = vor.u32 1.1754944e-38, %v501
    %v503 = vsel %vm500, %v502, %v498
    %v504 = vmul.f32 1.0, %v503
    %v505 = vrcp.pop %v487
    %v506 = vmul.f32 %v487, %v505
    %v507 = vsub.f32 1.0, %v506
    %v508 = vmul.f32 %v505, %v507
    %v509 = vadd.f32 %v505, %v508
    %vm510 = vweird.f32 %v487
    %vm511 = vweird.f32 %v505
    %vm512 = vmor %vm510, %vm511
    %v513 = vsel %vm512, %v505, %v509
    %v514 = vand.u32 2147483647, %v487
    %vm515 = vcmp.eq.f32.partialorder %v514, 8.507059e+37
    %v516 = vand.u32 %v487, 2147483648
    %v517 = vor.u32 1.1754944e-38, %v516
    %v518 = vsel %vm515, %v517, %v513
    %v519 = vmul.f32 1.0, %v518
    %v520 = vrcp.pop %v488
    %v521 = vmul.f32 %v488, %v520
    %v522 = vsub.f32 1.0, %v521
    %v523 = vmul.f32 %v520, %v522
    %v524 = vadd.f32 %v520, %v523
    %vm525 = vweird.f32 %v488
    %vm526 = vweird.f32 %v520
    %vm527 = vmor %vm525, %vm526
    %v528 = vsel %vm527, %v520, %v524
    %v529 = vand.u32 2147483647, %v488
    %vm530 = vcmp.eq.f32.partialorder %v529, 8.507059e+37
    %v531 = vand.u32 %v488, 2147483648
    %v532 = vor.u32 1.1754944e-38, %v531
    %v533 = vsel %vm530, %v532, %v528
    %v534 = vmul.f32 1.0, %v533
    %v535 = vrcp.pop %v489
    %v536 = vmul.f32 %v489, %v535
    %v537 = vsub.f32 1.0, %v536
    %v538 = vmul.f32 %v535, %v537
    %v539 = vadd.f32 %v535, %v538
    %vm540 = vweird.f32 %v489
    %vm541 = vweird.f32 %v535
    %vm542 = vmor %vm540, %vm541
    %v543 = vsel %vm542, %v535, %v539
    %v544 = vand.u32 2147483647, %v489
    %vm545 = vcmp.eq.f32.partialorder %v544, 8.507059e+37
    %v546 = vand.u32 %v489, 2147483648
    %v547 = vor.u32 1.1754944e-38, %v546
    %v548 = vsel %vm545, %v547, %v543
    %v549 = vmul.f32 1.0, %v548
    %550 = vxpose.xlu0.b32.start [1/16] %v64, 128
    %551 = vxpose.xlu0.b32.cont [2/16] %v65, 128
    %552 = vxpose.xlu0.b32.cont [3/16] %v66, 128
    %553 = vxpose.xlu0.b32.cont [4/16] %v67, 128
    %554 = vxpose.xlu0.b32.cont [5/16] 0.0, 128
    %555 = vxpose.xlu0.b32.cont [6/16] 0.0, 128
    %556 = vxpose.xlu0.b32.cont [7/16] 0.0, 128
    %557 = vxpose.xlu0.b32.cont [8/16] 0.0, 128
    %558 = vxpose.xlu0.b32.cont [9/16] 0.0, 128
    %559 = vxpose.xlu0.b32.cont [10/16] 0.0, 128
    %560 = vxpose.xlu0.b32.cont [11/16] 0.0, 128
    %561 = vxpose.xlu0.b32.cont [12/16] 0.0, 128
    %562 = vxpose.xlu0.b32.cont [13/16] 0.0, 128
    %563 = vxpose.xlu0.b32.cont [14/16] 0.0, 128
    %564 = vxpose.xlu0.b32.cont [15/16] 0.0, 128
    %565 = vxpose.xlu0.b32.end [16/16] 0.0, 128
    %v566 = vpop.trf.xlu0
    %v567 = vpop.trf.xlu0
    %v568 = vpop.trf.xlu0
    %v569 = vpop.trf.xlu0
    %v570 = vpop.trf.xlu0
    %v571 = vpop.trf.xlu0
    %v572 = vpop.trf.xlu0
    %v573 = vpop.trf.xlu0
    %v574 = vpop.trf.xlu0
    %v575 = vpop.trf.xlu0
    %v576 = vpop.trf.xlu0
    %v577 = vpop.trf.xlu0
    %v578 = vpop.trf.xlu0
    %v579 = vpop.trf.xlu0
    %v580 = vpop.trf.xlu0
    %v581 = vpop.trf.xlu0
    %v583 = vsel %vm283, %v566, 0
    %v586 = vsel %vm283, %v567, 0
    %588 = vmatpush.msra.mxu0 0.0
    %589 = vmatpush.msra.mxu0 0.0
    %590 = vmatpush.msra.mxu0 0.0
    %591 = vmatpush.msra.mxu0 0.0
    %592 = vmatpush.msra.mxu0 0.0
    %593 = vmatpush.msra.mxu0 0.0
    %594 = vmatpush.msra.mxu0 0.0
    %595 = vmatpush.msra.mxu0 0.0
    %596 = vmatpush.msra.mxu0 0.0
    %597 = vmatpush.msra.mxu0 0.0
    %598 = vmatpush.msra.mxu0 0.0
    %599 = vmatpush.msra.mxu0 0.0
    %600 = vmatpush.msra.mxu0 %v549
    %601 = vmatpush.msra.mxu0 %v534
    %602 = vmatpush.msra.mxu0 %v519
    %603 = vmatpush.msra.mxu0 %v504
    %604 = vmatmul.f32.gmra.mxu0 %v583
    %v605 = vpop.f32.mrf.mxu0
    %v606 = vadd.f32 0.0, %v605
    %607 = vmatmul.f32.gmra.mxu0 %v586
    %v608 = vpop.f32.mrf.mxu0
    %v609 = vadd.f32 0.0, %v608
    %610 = vdwg.mxu0
    %611 = vmatpush.msra.mxu0 0.0
    %612 = vmatpush.msra.mxu0 0.0
    %613 = vmatpush.msra.mxu0 0.0
    %614 = vmatpush.msra.mxu0 0.0
    %615 = vmatpush.msra.mxu0 0.0
    %616 = vmatpush.msra.mxu0 0.0
    %617 = vmatpush.msra.mxu0 0.0
    %618 = vmatpush.msra.mxu0 0.0
    %619 = vmatpush.msra.mxu0 0.0
    %620 = vmatpush.msra.mxu0 0.0
    %621 = vmatpush.msra.mxu0 0.0
    %622 = vmatpush.msra.mxu0 0.0
    %623 = vmatpush.msra.mxu0 0.0
    %624 = vmatpush.msra.mxu0 0.0
    %625 = vmatpush.msra.mxu0 %v609
    %626 = vmatpush.msra.mxu0 %v606
    %627 = vmatmul.f32.gmra.mxu0 %v426
    %v628 = vpop.f32.mrf.mxu0
    %v629 = vadd.f32 1e-06, %v628
    %630 = vmatmul.f32.gmra.mxu0 %v429
    %v631 = vpop.f32.mrf.mxu0
    %v632 = vadd.f32 1e-06, %v631
    %633 = vmatmul.f32.gmra.mxu0 %v432
    %v634 = vpop.f32.mrf.mxu0
    %v635 = vadd.f32 1e-06, %v634
    %636 = vmatmul.f32.gmra.mxu0 %v435
    %v637 = vpop.f32.mrf.mxu0
    %v638 = vadd.f32 1e-06, %v637
    %639 = vdwg.mxu0
    %v640 = vrcp.pop %v629
    %v641 = vmul.f32 %v629, %v640
    %v642 = vsub.f32 1.0, %v641
    %v643 = vmul.f32 %v640, %v642
    %v644 = vadd.f32 %v640, %v643
    %vm645 = vweird.f32 %v629
    %vm646 = vweird.f32 %v640
    %vm647 = vmor %vm645, %vm646
    %v648 = vsel %vm647, %v640, %v644
    %v649 = vand.u32 2147483647, %v629
    %vm650 = vcmp.eq.f32.partialorder %v649, 8.507059e+37
    %v651 = vand.u32 %v629, 2147483648
    %v652 = vor.u32 1.1754944e-38, %v651
    %v653 = vsel %vm650, %v652, %v648
    %v654 = vmul.f32 %v504, %v653
    %v655 = vrcp.pop %v632
    %v656 = vmul.f32 %v632, %v655
    %v657 = vsub.f32 1.0, %v656
    %v658 = vmul.f32 %v655, %v657
    %v659 = vadd.f32 %v655, %v658
    %vm660 = vweird.f32 %v632
    %vm661 = vweird.f32 %v655
    %vm662 = vmor %vm660, %vm661
    %v663 = vsel %vm662, %v655, %v659
    %v664 = vand.u32 2147483647, %v632
    %vm665 = vcmp.eq.f32.partialorder %v664, 8.507059e+37
    %v666 = vand.u32 %v632, 2147483648
    %v667 = vor.u32 1.1754944e-38, %v666
    %v668 = vsel %vm665, %v667, %v663
    %v669 = vmul.f32 %v519, %v668
    %v670 = vrcp.pop %v635
    %v671 = vmul.f32 %v635, %v670
    %v672 = vsub.f32 1.0, %v671
    %v673 = vmul.f32 %v670, %v672
    %v674 = vadd.f32 %v670, %v673
    %vm675 = vweird.f32 %v635
    %vm676 = vweird.f32 %v670
    %vm677 = vmor %vm675, %vm676
    %v678 = vsel %vm677, %v670, %v674
    %v679 = vand.u32 2147483647, %v635
    %vm680 = vcmp.eq.f32.partialorder %v679, 8.507059e+37
    %v681 = vand.u32 %v635, 2147483648
    %v682 = vor.u32 1.1754944e-38, %v681
    %v683 = vsel %vm680, %v682, %v678
    %v684 = vmul.f32 %v534, %v683
    %v685 = vrcp.pop %v638
    %v686 = vmul.f32 %v638, %v685
    %v687 = vsub.f32 1.0, %v686
    %v688 = vmul.f32 %v685, %v687
    %v689 = vadd.f32 %v685, %v688
    %vm690 = vweird.f32 %v638
    %vm691 = vweird.f32 %v685
    %vm692 = vmor %vm690, %vm691
    %v693 = vsel %vm692, %v685, %v689
    %v694 = vand.u32 2147483647, %v638
    %vm695 = vcmp.eq.f32.partialorder %v694, 8.507059e+37
    %v696 = vand.u32 %v638, 2147483648
    %v697 = vor.u32 1.1754944e-38, %v696
    %v698 = vsel %vm695, %v697, %v693
    %v699 = vmul.f32 %v549, %v698
    %v700 = vmul.f32 %v654, %v385
    %v701 = vmul.f32 %v669, %v388
    %v702 = vmul.f32 %v684, %v391
    %v703 = vmul.f32 %v699, %v394
    %v704 = vmul.f32 %v654, %v414
    %v705 = vmul.f32 %v669, %v417
    %v706 = vmul.f32 %v684, %v420
    %v707 = vmul.f32 %v699, %v423
    %708 = vmatpush.msra.mxu0 0.0
    %709 = vmatpush.msra.mxu0 0.0
    %710 = vmatpush.msra.mxu0 0.0
    %711 = vmatpush.msra.mxu0 0.0
    %712 = vmatpush.msra.mxu0 0.0
    %713 = vmatpush.msra.mxu0 0.0
    %714 = vmatpush.msra.mxu0 0.0
    %715 = vmatpush.msra.mxu0 0.0
    %716 = vmatpush.msra.mxu0 0.0
    %717 = vmatpush.msra.mxu0 0.0
    %718 = vmatpush.msra.mxu0 0.0
    %719 = vmatpush.msra.mxu0 0.0
    %720 = vmatpush.msra.mxu0 %v703
    %721 = vmatpush.msra.mxu0 %v702
    %722 = vmatpush.msra.mxu0 %v701
    %723 = vmatpush.msra.mxu0 %v700
    %724 = vmatmul.f32.gmra.mxu0 %v583
    %v725 = vpop.f32.mrf.mxu0
    %v726 = vadd.f32 0.0, %v725
    %727 = vmatmul.f32.gmra.mxu0 %v586
    %v728 = vpop.f32.mrf.mxu0
    %v729 = vadd.f32 0.0, %v728
    %730 = vdwg.mxu0
    %731 = vmatpush.msra.mxu0 0.0
    %732 = vmatpush.msra.mxu0 0.0
    %733 = vmatpush.msra.mxu0 0.0
    %734 = vmatpush.msra.mxu0 0.0
    %735 = vmatpush.msra.mxu0 0.0
    %736 = vmatpush.msra.mxu0 0.0
    %737 = vmatpush.msra.mxu0 0.0
    %738 = vmatpush.msra.mxu0 0.0
    %739 = vmatpush.msra.mxu0 0.0
    %740 = vmatpush.msra.mxu0 0.0
    %741 = vmatpush.msra.mxu0 0.0
    %742 = vmatpush.msra.mxu0 0.0
    %743 = vmatpush.msra.mxu0 %v707
    %744 = vmatpush.msra.mxu0 %v706
    %745 = vmatpush.msra.mxu0 %v705
    %746 = vmatpush.msra.mxu0 %v704
    %747 = vmatmul.f32.gmra.mxu0 %v583
    %v748 = vpop.f32.mrf.mxu0
    %v749 = vadd.f32 0.0, %v748
    %750 = vmatmul.f32.gmra.mxu0 %v586
    %v751 = vpop.f32.mrf.mxu0
    %v752 = vadd.f32 0.0, %v751
    %753 = vdwg.mxu0
    %v754 = vadd.f32 %v155, %v726
    %v755 = vadd.f32 %v158, %v729
    %v756 = vadd.f32 %v201, %v749
    %v757 = vadd.f32 %v204, %v752
    %v758 = vld [vmem:[%s8] sm:$0x1]
    %v759 = vld [vmem:[%s9] sm:$0x1]
    %v760 = vadd.f32 %v754, %v755
    %v761 = vrot.slane %v760, 4
    %v762 = vadd.f32 %v760, %v761
    %v763 = vrot.slane %v762, 2
    %v764 = vadd.f32 %v762, %v763
    %v765 = vrot.slane %v764, 1
    %v766 = vadd.f32 %v764, %v765
    %v767 = vrcp.pop 16.0
    %v768 = vmul.f32 16.0, %v767
    %v769 = vsub.f32 1.0, %v768
    %v770 = vmul.f32 %v767, %v769
    %v771 = vadd.f32 %v767, %v770
    %vm772 = vweird.f32 %v767
    %v773 = vsel %vm772, %v767, %v771
    %v774 = vmul.f32 %v766, %v773
    %v775 = vsub.f32 %v754, %v774
    %v776 = vsub.f32 %v755, %v774
    %v777 = vmul.f32 %v775, %v775
    %v778 = vmul.f32 %v776, %v776
    %v779 = vadd.f32 %v777, %v778
    %v780 = vrot.slane %v779, 4
    %v781 = vadd.f32 %v779, %v780
    %v782 = vrot.slane %v781, 2
    %v783 = vadd.f32 %v781, %v782
    %v784 = vrot.slane %v783, 1
    %v785 = vadd.f32 %v783, %v784
    %v786 = vmul.f32 %v785, %v773
    %v787 = vadd.f32 %v786, 1e-05
    %v788 = vrsqrt.pop %v787
    %v789 = vmul.f32 %v788, %v787
    %v790 = vmul.f32 %v789, %v788
    %v791 = vmul.f32 0.5, %v790
    %v792 = vsub.f32 1.5, %v791
    %v793 = vmul.f32 %v788, %v792
    %vm794 = vweird.f32 %v787
    %vm795 = vweird.f32 %v788
    %vm796 = vmor %vm794, %vm795
    %v797 = vsel %vm796, %v788, %v793
    %v798 = vmul.f32 %v775, %v797
    %v799 = vmul.f32 %v776, %v797
    %v801 = vperm.slane %v758, 0
    %v803 = vmul.f32 %v798, %v801
    %v804 = vmul.f32 %v799, %v801
    %v806 = vperm.slane %v759, 0
    %v808 = vadd.f32 %v803, %v806
    %v809 = vadd.f32 %v804, %v806
    %v810 = vmax.f32 %v808, 0.0
    %v811 = vmax.f32 %v809, 0.0
    %812 = vst [vmem:[#allocation2] sm:$0xff] %v810
    %813 = vst [vmem:[#allocation2 + $0x8] sm:$0xff] %v811
    %v814 = vld [vmem:[%s10] sm:$0x1]
    %v815 = vld [vmem:[%s11] sm:$0x1]
    %v816 = vadd.f32 %v470, %v471
    %v817 = vadd.f32 %v816, %v472
    %v818 = vadd.f32 %v817, %v473
    %v819 = vrot.slane %v818, 4
    %v820 = vadd.f32 %v818, %v819
    %v821 = vrot.slane %v820, 2
    %v822 = vadd.f32 %v820, %v821
    %v823 = vrot.slane %v822, 1
    %v824 = vadd.f32 %v822, %v823
    %v825 = vrcp.pop 32.0
    %v826 = vmul.f32 32.0, %v825
    %v827 = vsub.f32 1.0, %v826
    %v828 = vmul.f32 %v825, %v827
    %v829 = vadd.f32 %v825, %v828
    %vm830 = vweird.f32 %v825
    %v831 = vsel %vm830, %v825, %v829
    %v832 = vmul.f32 %v824, %v831
    %v833 = vsub.f32 %v470, %v832
    %v834 = vsub.f32 %v471, %v832
    %v835 = vsub.f32 %v472, %v832
    %v836 = vsub.f32 %v473, %v832
    %v837 = vmul.f32 %v833, %v833
    %v838 = vmul.f32 %v834, %v834
    %v839 = vmul.f32 %v835, %v835
    %v840 = vmul.f32 %v836, %v836
    %v841 = vadd.f32 %v837, %v838
    %v842 = vadd.f32 %v841, %v839
    %v843 = vadd.f32 %v842, %v840
    %v844 = vrot.slane %v843, 4
    %v845 = vadd.f32 %v843, %v844
    %v846 = vrot.slane %v845, 2
    %v847 = vadd.f32 %v845, %v846
    %v848 = vrot.slane %v847, 1
    %v849 = vadd.f32 %v847, %v848
    %v850 = vmul.f32 %v849, %v831
    %v851 = vadd.f32 %v850, 1e-05
    %v852 = vrsqrt.pop %v851
    %v853 = vmul.f32 %v852, %v851
    %v854 = vmul.f32 %v853, %v852
    %v855 = vmul.f32 0.5, %v854
    %v856 = vsub.f32 1.5, %v855
    %v857 = vmul.f32 %v852, %v856
    %vm858 = vweird.f32 %v851
    %vm859 = vweird.f32 %v852
    %vm860 = vmor %vm858, %vm859
    %v861 = vsel %vm860, %v852, %v857
    %v862 = vmul.f32 %v833, %v861
    %v863 = vmul.f32 %v834, %v861
    %v864 = vmul.f32 %v835, %v861
    %v865 = vmul.f32 %v836, %v861
    %v867 = vperm.slane %v814, 0
    %v869 = vmul.f32 %v862, %v867
    %v870 = vmul.f32 %v863, %v867
    %v871 = vmul.f32 %v864, %v867
    %v872 = vmul.f32 %v865, %v867
    %v874 = vperm.slane %v815, 0
    %v876 = vadd.f32 %v869, %v874
    %v877 = vadd.f32 %v870, %v874
    %v878 = vadd.f32 %v871, %v874
    %v879 = vadd.f32 %v872, %v874
    %v880 = vmax.f32 %v876, 0.0
    %v881 = vmax.f32 %v877, 0.0
    %v882 = vmax.f32 %v878, 0.0
    %v883 = vmax.f32 %v879, 0.0
    %884 = vst [vmem:[#allocation4] sm:$0xff] %v880
    %885 = vst [vmem:[#allocation4 + $0x8] sm:$0xff] %v881
    %886 = vst [vmem:[#allocation4 + $0x10] sm:$0xff] %v882
    %887 = vst [vmem:[#allocation4 + $0x18] sm:$0xff] %v883
    %v888 = vtanh.pop %v756
    %v889 = vtanh.pop %v757
    %890 = vst [vmem:[#allocation6] sm:$0xff] %v888
    %891 = vst [vmem:[#allocation6 + $0x8] sm:$0xff] %v889
    // Predicated region
    $region50: #{ggcn_lspe_forward.1} parent=1 // pred_check
      _
    $region51: #{ggcn_lspe_forward.1} parent=1 // pred_check_branch
      %893 = sbr.rel (0) target = $region53
    $region52: #{ggcn_lspe_forward.1} parent=1 // pred_region
      %895 = vsyncadd [#allocation3], 0
      %s896 = sshll.u32 [#allocation2], 4
      %s897 = int_to_ptr.vmem [resolvable:$true] %s896
      %s898 = sshll.u32 %s12, 4
      %s899 = int_to_ptr.hbm [resolvable:$true] %s898
      %904 = dma.vmem_to_hbm [thread:$0]  %s897, 256, %s899, [#allocation3], 128, 128, 8
    $region53: #{ggcn_lspe_forward.1} parent=1 // pred_fallthru
      _
    // Predicated region
    $region54: #{ggcn_lspe_forward.1} parent=1 // pred_check
      _
    $region55: #{ggcn_lspe_forward.1} parent=1 // pred_check_branch
      %906 = sbr.rel (0) target = $region57
    $region56: #{ggcn_lspe_forward.1} parent=1 // pred_region
      %908 = vsyncadd [#allocation5], 0
      %s909 = sshll.u32 [#allocation4], 4
      %s910 = int_to_ptr.vmem [resolvable:$true] %s909
      %s911 = sshll.u32 %s13, 4
      %s912 = int_to_ptr.hbm [resolvable:$true] %s911
      %917 = dma.vmem_to_hbm [thread:$0]  %s910, 512, %s912, [#allocation5], 128, 128, 8
    $region57: #{ggcn_lspe_forward.1} parent=1 // pred_fallthru
      _
    // Predicated region
    $region58: #{ggcn_lspe_forward.1} parent=1 // pred_check
      _
    $region59: #{ggcn_lspe_forward.1} parent=1 // pred_check_branch
      %919 = sbr.rel (0) target = $region61
    $region60: #{ggcn_lspe_forward.1} parent=1 // pred_region
      %921 = vsyncadd [#allocation5], 0
      %s922 = sshll.u32 [#allocation6], 4
      %s923 = int_to_ptr.vmem [resolvable:$true] %s922
      %s924 = sshll.u32 %s14, 4
      %s925 = int_to_ptr.hbm [resolvable:$true] %s924
      %930 = dma.vmem_to_hbm [thread:$0]  %s923, 256, %s925, [#allocation5], 128, 128, 8
    $region61: #{ggcn_lspe_forward.1} parent=1 // pred_fallthru
      _
    // Predicated region
    $region62: #{ggcn_lspe_forward.1} parent=1 // pred_check
      _
    $region63: #{ggcn_lspe_forward.1} parent=1 // pred_check_branch
      %932 = sbr.rel (0) target = $region65
    $region64: #{ggcn_lspe_forward.1} parent=1 // pred_region
      %934 = dma.done [#allocation3], 256
    $region65: #{ggcn_lspe_forward.1} parent=1 // pred_fallthru
      _
    // Predicated region
    $region66: #{ggcn_lspe_forward.1} parent=1 // pred_check
      _
    $region67: #{ggcn_lspe_forward.1} parent=1 // pred_check_branch
      %936 = sbr.rel (0) target = $region69
    $region68: #{ggcn_lspe_forward.1} parent=1 // pred_region
      %938 = dma.done [#allocation5], 512
    $region69: #{ggcn_lspe_forward.1} parent=1 // pred_fallthru
      _
    // Predicated region
    $region70: #{ggcn_lspe_forward.1} parent=1 // pred_check
      _
    $region71: #{ggcn_lspe_forward.1} parent=1 // pred_check_branch
      %940 = sbr.rel (0) target = $region73
    $region72: #{ggcn_lspe_forward.1} parent=1 // pred_region
      %942 = dma.done [#allocation5], 256
    $region73: #{ggcn_lspe_forward.1} parent=1 // pred_fallthru
      _
    %943 = vsyncpa [#allocation3], 1
    %944 = vsyncpa [#allocation5], 1

</llo_original>
